<compile_context>
chip_gen: v6e
topology: v6e:2x2x1
jax: 0.10.0
libtpu: 0.0.40
codegen_flags: <defaults>
</compile_context>

<pallas_src>
import functools

import jax
import jax.numpy as jnp
from jax.experimental import pallas as pl
from jax.experimental.pallas import tpu as pltpu

EPS = 1e-5
LANE = 128


def _round_up(n, m=LANE):
    return ((n + m - 1) // m) * m


# ----------------------------------------------------------------------------
# Kernel
# ----------------------------------------------------------------------------
def _outside_com_kernel(x_ref, w1_ref, w2_ref, w3_ref, vec_ref, out_ref):
    inv_b = 1.0 / x_ref.shape[0]
    hidden = w1_ref.shape[1]          # unpadded hidden width (static)
    vp = w3_ref.shape[1]              # lane-padded vocab width (static, 128)

    vec = vec_ref[...]                # (8, >=128) packed f32 vectors
    g1, be1 = vec[0:1, :hidden], vec[1:2, :hidden]
    g2, be2 = vec[2:3, :hidden], vec[3:4, :hidden]
    b3 = vec[4:5, :vp]

    def bn_relu(h, g, be):
        # training-mode BatchNorm1d (biased batch variance), two-pass stats,
        # fused affine + relu.  rsqrt goes to the EUP slot.
        mean = jnp.sum(h, axis=0, keepdims=True) * inv_b
        d = h - mean
        var = jnp.sum(d * d, axis=0, keepdims=True) * inv_b
        scale = g * jax.lax.rsqrt(var + EPS)
        return jnp.maximum(d * scale + be, 0.0)

    # fc1 (bias dropped: cancelled by training-mode BN) -> bn1 -> relu
    x = x_ref[...].astype(jnp.bfloat16)                     # bf16 MXU inputs
    h = jnp.dot(x, w1_ref[...], preferred_element_type=jnp.float32)
    h = bn_relu(h, g1, be1)
    # fc2 (bias dropped) -> bn2 -> relu
    h = jnp.dot(h.astype(jnp.bfloat16), w2_ref[...],
                preferred_element_type=jnp.float32)
    h = bn_relu(h, g2, be2)
    # fc3 (+ bias), lane-dense (B, 128) store
    out_ref[...] = jnp.dot(h.astype(jnp.bfloat16), w3_ref[...],
                           preferred_element_type=jnp.float32) + b3


# ----------------------------------------------------------------------------
# One-time parameter transform (hoisted out of the per-call path)
# ----------------------------------------------------------------------------
def prepare_params(params):
    """Cast weights to bf16, pad only the output lane dim, pack BN vectors.

    Run ONCE (at init / whenever the params change), not per forward call.
    b1/b2 are dropped: a Linear bias immediately followed by training-mode
    BatchNorm is mathematically cancelled.
    """
    (w1, b1, g1, be1, w2, b2, g2, be2, w3, b3) = params
    del b1, b2
    hidden = w1.shape[1]
    vocab = w3.shape[1]
    vp = _round_up(vocab)

    w1_p = w1.astype(jnp.bfloat16)                                  # (F, H)
    w2_p = w2.astype(jnp.bfloat16)                                  # (H, H)
    w3_p = jnp.pad(w3.astype(jnp.float32),
                   ((0, 0), (0, vp - vocab))).astype(jnp.bfloat16)  # (H, VP)

    vw = max(hidden, vp)
    vec = jnp.zeros((8, vw), jnp.float32)
    vec = vec.at[0, :hidden].set(g1.reshape(-1).astype(jnp.float32))
    vec = vec.at[1, :hidden].set(be1.reshape(-1).astype(jnp.float32))
    vec = vec.at[2, :hidden].set(g2.reshape(-1).astype(jnp.float32))
    vec = vec.at[3, :hidden].set(be2.reshape(-1).astype(jnp.float32))
    vec = vec.at[4, :vp].set(
        jnp.pad(b3.reshape(-1).astype(jnp.float32), (0, vp - vocab)))
    return (w1_p, w2_p, w3_p, vec)


# ----------------------------------------------------------------------------
# Forward
# ----------------------------------------------------------------------------
@functools.partial(jax.jit, static_argnames=("vocab_size",))
def outside_com_forward(x, prepared, vocab_size):
    """x: (batch, input_dim, input_range) -> (batch, vocab_size) float32."""
    w1_p, w2_p, w3_p, vec = prepared
    batch = x.shape[0]
    in_feat, hidden = w1_p.shape
    vp = w3_p.shape[1]

    x2 = x.reshape(batch, in_feat).astype(jnp.float32)

    cost = pl.CostEstimate(
        flops=2 * batch * (in_feat * hidden + hidden * hidden + hidden * vp),
        transcendentals=2 * hidden,
        bytes_accessed=(x2.size * 4 + w1_p.size * 2 + w2_p.size * 2
                        + w3_p.size * 2 + vec.size * 4 + batch * vp * 4),
    )

    vmem_spec = pl.BlockSpec(memory_space=pltpu.MemorySpace.VMEM)
    out_p = pl.pallas_call(
        _outside_com_kernel,
        out_shape=jax.ShapeDtypeStruct((batch, vp), jnp.float32),
        in_specs=[vmem_spec] * 5,
        out_specs=vmem_spec,
        cost_estimate=cost,
    )(x2, w1_p, w2_p, w3_p, vec)

    # Padded columns are exactly zero (padded w3/b3 columns are zero); slice
    # back to the module's (batch, vocab) contract.
    return out_p[:, :vocab_size]


# ----------------------------------------------------------------------------
# Init + reference
# ----------------------------------------------------------------------------
def init_params(key, input_dim, input_range, hidden_dim, vocab_size):
    """Deterministic synthetic init (PyTorch-like uniform bounds).

    Weights are stored transposed: (in_features, out_features).  b1/b2 are
    created for module fidelity but dropped in the optimized forward
    (cancelled by training-mode BatchNorm).
    """
    in_feat = input_dim * input_range
    keys = jax.random.split(key, 3)

    def lin(k, fan_in, fan_out):
        kw, kb = jax.random.split(k)
        bound = 1.0 / jnp.sqrt(fan_in)
        w = jax.random.uniform(kw, (fan_in, fan_out), jnp.float32, -bound, bound)
        b = jax.random.uniform(kb, (1, fan_out), jnp.float32, -bound, bound)
        return w, b

    w1, b1 = lin(keys[0], in_feat, hidden_dim)
    w2, b2 = lin(keys[1], hidden_dim, hidden_dim)
    w3, b3 = lin(keys[2], hidden_dim, vocab_size)
    g1 = jnp.ones((1, hidden_dim), jnp.float32)
    be1 = jnp.zeros((1, hidden_dim), jnp.float32)
    g2 = jnp.ones((1, hidden_dim), jnp.float32)
    be2 = jnp.zeros((1, hidden_dim), jnp.float32)
    return (w1, b1, g1, be1, w2, b2, g2, be2, w3, b3)


def _reference_forward(x, params, matmul_dtype=jnp.float32):
    """Pure-JAX reference with the original (bias-included) formulation."""
    (w1, b1, g1, be1, w2, b2, g2, be2, w3, b3) = params
    batch = x.shape[0]
    h = x.reshape(batch, -1).astype(jnp.float32)

    def dot(a, w):
        return jnp.dot(a.astype(matmul_dtype), w.astype(matmul_dtype),
                       preferred_element_type=jnp.float32)

    def block(h, w, b, g, be):
        h = dot(h, w) + b
        mean = jnp.mean(h, axis=0, keepdims=True)
        var = jnp.mean((h - mean) ** 2, axis=0, keepdims=True)
        h = (h - mean) / jnp.sqrt(var + EPS) * g + be
        return jnp.maximum(h, 0.0)

    h = block(h, w1, b1, g1, be1)
    h = block(h, w2, b2, g2, be2)
    return dot(h, w3) + b3


# TODO(synk): BatchNorm running-stat buffer updates (train-mode side effect)
# are not modeled; only the returned forward output is computed.

if __name__ == "__main__":
    input_dim, input_range, hidden_dim, vocab_size = 4, 4, 32, 16
    batch = 8

    key = jax.random.PRNGKey(0)
    kx, kp = jax.random.split(key)

    params = init_params(kp, input_dim, input_range, hidden_dim, vocab_size)
    prepared = prepare_params(params)          # one-time, outside the hot path

    # one-hot input of shape (batch, input_dim, input_range)
    idx = jax.random.randint(kx, (batch, input_dim), 0, input_range)
    x = jax.nn.one_hot(idx, input_range, dtype=jnp.float32)

    out = outside_com_forward(x, prepared, vocab_size=vocab_size)
    jax.block_until_ready(out)

    assert out.shape == (batch, vocab_size), out.shape
    assert bool(jnp.all(jnp.isfinite(out)))

    # Tight check vs. a matched-precision (bf16 MXU inputs, f32 accum) ref:
    ref_bf16 = _reference_forward(x, params, matmul_dtype=jnp.bfloat16)
    assert bool(jnp.allclose(out, ref_bf16, atol=1e-3, rtol=1e-3)), (
        float(jnp.max(jnp.abs(out - ref_bf16)))
    )
    # Loose check vs. the exact f32 module semantics (bf16 MXU rounding only):
    ref_f32 = _reference_forward(x, params, matmul_dtype=jnp.float32)
    assert bool(jnp.allclose(out, ref_f32, atol=5e-2, rtol=5e-2)), (
        float(jnp.max(jnp.abs(out - ref_f32)))
    )
    print("KERNEL_OK")
</pallas_src>

<mosaic_0001>
module attributes {stable_mosaic.version = 11 : i64} {
  func.func @_outside_com_kernel(%arg0: memref<8x16xf32, #tpu.memory_space<vmem>>, %arg1: memref<16x32xbf16, #tpu.memory_space<vmem>>, %arg2: memref<32x32xbf16, #tpu.memory_space<vmem>>, %arg3: memref<32x128xbf16, #tpu.memory_space<vmem>>, %arg4: memref<8x128xf32, #tpu.memory_space<vmem>>, %arg5: memref<8x128xf32, #tpu.memory_space<vmem>>) attributes {dimension_semantics = [], scalar_prefetch = 0 : i64, scratch_operands = 0 : i64, tpu.core_type = #tpu.core_type<tc>} {
    %c0 = arith.constant 0 : index
    %c0_0 = arith.constant 0 : index
    %0 = vector.load %arg4[%c0, %c0_0] : memref<8x128xf32, #tpu.memory_space<vmem>>, vector<8x128xf32>
    %1 = vector.extract_strided_slice %0 {offsets = [0, 0], sizes = [1, 32], strides = [1, 1]} : vector<8x128xf32> to vector<1x32xf32>
    %2 = vector.extract_strided_slice %0 {offsets = [1, 0], sizes = [1, 32], strides = [1, 1]} : vector<8x128xf32> to vector<1x32xf32>
    %3 = vector.extract_strided_slice %0 {offsets = [2, 0], sizes = [1, 32], strides = [1, 1]} : vector<8x128xf32> to vector<1x32xf32>
    %4 = vector.extract_strided_slice %0 {offsets = [3, 0], sizes = [1, 32], strides = [1, 1]} : vector<8x128xf32> to vector<1x32xf32>
    %5 = vector.extract_strided_slice %0 {offsets = [4, 0], sizes = [1, 128], strides = [1, 1]} : vector<8x128xf32> to vector<1x128xf32>
    %c0_1 = arith.constant 0 : index
    %c0_2 = arith.constant 0 : index
    %6 = vector.load %arg0[%c0_1, %c0_2] : memref<8x16xf32, #tpu.memory_space<vmem>>, vector<8x16xf32>
    %7 = arith.truncf %6 : vector<8x16xf32> to vector<8x16xbf16>
    %c0_3 = arith.constant 0 : index
    %c0_4 = arith.constant 0 : index
    %8 = vector.load %arg1[%c0_3, %c0_4] : memref<16x32xbf16, #tpu.memory_space<vmem>>, vector<16x32xbf16>
    %cst = arith.constant dense<0.000000e+00> : vector<8x32xf32>
    %9 = tpu.matmul %7, %8, %cst {dimension_numbers = #tpu.dot_dimension_numbers<[1], [0], [0], [1], [0, 0, 1, 1], [], []>} : vector<8x16xbf16>, vector<16x32xbf16>, vector<8x32xf32> -> vector<8x32xf32>
    %cst_5 = arith.constant dense<0.000000e+00> : vector<32xf32>
    %10 = vector.multi_reduction <add>, %9, %cst_5 [0] : vector<8x32xf32> to vector<32xf32>
    %11 = vector.shape_cast %10 : vector<32xf32> to vector<1x32xf32>
    %cst_6 = arith.constant 1.250000e-01 : f32
    %12 = vector.broadcast %cst_6 : f32 to vector<1x32xf32>
    %13 = arith.mulf %11, %12 : vector<1x32xf32>
    %14 = vector.broadcast %13 : vector<1x32xf32> to vector<8x32xf32>
    %15 = arith.subf %9, %14 : vector<8x32xf32>
    %16 = arith.mulf %15, %15 : vector<8x32xf32>
    %cst_7 = arith.constant dense<0.000000e+00> : vector<32xf32>
    %17 = vector.multi_reduction <add>, %16, %cst_7 [0] : vector<8x32xf32> to vector<32xf32>
    %18 = vector.shape_cast %17 : vector<32xf32> to vector<1x32xf32>
    %cst_8 = arith.constant 1.250000e-01 : f32
    %19 = vector.broadcast %cst_8 : f32 to vector<1x32xf32>
    %20 = arith.mulf %18, %19 : vector<1x32xf32>
    %cst_9 = arith.constant 9.99999974E-6 : f32
    %21 = vector.broadcast %cst_9 : f32 to vector<1x32xf32>
    %22 = arith.addf %20, %21 : vector<1x32xf32>
    %23 = math.rsqrt %22 : vector<1x32xf32>
    %24 = arith.mulf %1, %23 : vector<1x32xf32>
    %25 = vector.broadcast %24 : vector<1x32xf32> to vector<8x32xf32>
    %26 = arith.mulf %15, %25 : vector<8x32xf32>
    %27 = vector.broadcast %2 : vector<1x32xf32> to vector<8x32xf32>
    %28 = arith.addf %26, %27 : vector<8x32xf32>
    %cst_10 = arith.constant 0.000000e+00 : f32
    %29 = vector.broadcast %cst_10 : f32 to vector<8x32xf32>
    %30 = arith.maximumf %28, %29 : vector<8x32xf32>
    %31 = arith.truncf %30 : vector<8x32xf32> to vector<8x32xbf16>
    %c0_11 = arith.constant 0 : index
    %c0_12 = arith.constant 0 : index
    %32 = vector.load %arg2[%c0_11, %c0_12] : memref<32x32xbf16, #tpu.memory_space<vmem>>, vector<32x32xbf16>
    %cst_13 = arith.constant dense<0.000000e+00> : vector<8x32xf32>
    %33 = tpu.matmul %31, %32, %cst_13 {dimension_numbers = #tpu.dot_dimension_numbers<[1], [0], [0], [1], [0, 0, 1, 1], [], []>} : vector<8x32xbf16>, vector<32x32xbf16>, vector<8x32xf32> -> vector<8x32xf32>
    %cst_14 = arith.constant dense<0.000000e+00> : vector<32xf32>
    %34 = vector.multi_reduction <add>, %33, %cst_14 [0] : vector<8x32xf32> to vector<32xf32>
    %35 = vector.shape_cast %34 : vector<32xf32> to vector<1x32xf32>
    %cst_15 = arith.constant 1.250000e-01 : f32
    %36 = vector.broadcast %cst_15 : f32 to vector<1x32xf32>
    %37 = arith.mulf %35, %36 : vector<1x32xf32>
    %38 = vector.broadcast %37 : vector<1x32xf32> to vector<8x32xf32>
    %39 = arith.subf %33, %38 : vector<8x32xf32>
    %40 = arith.mulf %39, %39 : vector<8x32xf32>
    %cst_16 = arith.constant dense<0.000000e+00> : vector<32xf32>
    %41 = vector.multi_reduction <add>, %40, %cst_16 [0] : vector<8x32xf32> to vector<32xf32>
    %42 = vector.shape_cast %41 : vector<32xf32> to vector<1x32xf32>
    %cst_17 = arith.constant 1.250000e-01 : f32
    %43 = vector.broadcast %cst_17 : f32 to vector<1x32xf32>
    %44 = arith.mulf %42, %43 : vector<1x32xf32>
    %cst_18 = arith.constant 9.99999974E-6 : f32
    %45 = vector.broadcast %cst_18 : f32 to vector<1x32xf32>
    %46 = arith.addf %44, %45 : vector<1x32xf32>
    %47 = math.rsqrt %46 : vector<1x32xf32>
    %48 = arith.mulf %3, %47 : vector<1x32xf32>
    %49 = vector.broadcast %48 : vector<1x32xf32> to vector<8x32xf32>
    %50 = arith.mulf %39, %49 : vector<8x32xf32>
    %51 = vector.broadcast %4 : vector<1x32xf32> to vector<8x32xf32>
    %52 = arith.addf %50, %51 : vector<8x32xf32>
    %cst_19 = arith.constant 0.000000e+00 : f32
    %53 = vector.broadcast %cst_19 : f32 to vector<8x32xf32>
    %54 = arith.maximumf %52, %53 : vector<8x32xf32>
    %55 = arith.truncf %54 : vector<8x32xf32> to vector<8x32xbf16>
    %c0_20 = arith.constant 0 : index
    %c0_21 = arith.constant 0 : index
    %56 = vector.load %arg3[%c0_20, %c0_21] : memref<32x128xbf16, #tpu.memory_space<vmem>>, vector<32x128xbf16>
    %cst_22 = arith.constant dense<0.000000e+00> : vector<8x128xf32>
    %57 = tpu.matmul %55, %56, %cst_22 {dimension_numbers = #tpu.dot_dimension_numbers<[1], [0], [0], [1], [0, 0, 1, 1], [], []>} : vector<8x32xbf16>, vector<32x128xbf16>, vector<8x128xf32> -> vector<8x128xf32>
    %58 = vector.broadcast %5 : vector<1x128xf32> to vector<8x128xf32>
    %59 = arith.addf %57, %58 : vector<8x128xf32>
    %c0_23 = arith.constant 0 : index
    %c0_24 = arith.constant 0 : index
    %60 = vector.load %arg5[%c0_23, %c0_24] : memref<8x128xf32, #tpu.memory_space<vmem>>, vector<8x128xf32>
    tpu.vector_store %arg5[%c0_23, %c0_24], %59 {strides = array<i32>} : memref<8x128xf32, #tpu.memory_space<vmem>>, vector<8x128xf32>,
    return
  }
}

</mosaic_0001>

<llo_original>
// kernel: outside_com_forward.1
$region0: #{outside_com_forward.1}
  #allocation0 [shape = 'u32[]', space=smem, size = 0x4, offset = 0x4, fixed_abs, tag = 'smem constant byte address 0x4 - core index']
  #allocation1 [shape = 'u32[144,128]{1,0:T(1,128)}', space=vmem, size = 0x12000, scoped, tag = 'internal scratch']
  %s0 = inlined_call_operand.vmem [shape: f32[8,16], index: 0, kind: input, shape index: {}]
  %s1 = inlined_call_operand.vmem [shape: bf16[16,32], index: 1, kind: input, shape index: {}]
  %s2 = inlined_call_operand.vmem [shape: bf16[32,32], index: 2, kind: input, shape index: {}]
  %s3 = inlined_call_operand.hbm [shape: bf16[32,128], index: 3, kind: input, shape index: {}]
  %s4 = inlined_call_operand.vmem [shape: f32[8,128], index: 4, kind: input, shape index: {}]
  %s5 = inlined_call_operand.hbm [shape: f32[8,128], index: 5, kind: output, shape index: {}]
  %s6 = sld [smem:[#allocation0]]
  $region34: #{outside_com_forward.1} parent=0
    _
  %s8 = ssub.s32 1, %s6
  %s9 = scalar_select 0, %s8, %s6
  $region1: #{outside_com_forward.1} parent=0
    #allocation2 [shape = 'u8[8192]{0}', space=vmem, size = 0x2000, scoped, tag = 'input window, operand 3, single buffered']
    #allocation3 [shape = 's32[1]{0}', space=sflag, size = 0x4, scoped, tag = 'scoped memory for outside_com_forward.1']
    #allocation4 [shape = 's32[1]{0}', space=sflag, size = 0x4, scoped, tag = 'scoped memory for outside_com_forward.1']
    #allocation5 [shape = 'u8[4096]{0}', space=vmem, size = 0x1000, scoped, tag = 'output window, operand 0, single buffered']
    %10 = vsyncpa [#allocation3], 0
    %11 = vsyncpa [#allocation4], 0
    // Predicated region
    $region2: #{outside_com_forward.1} parent=1 // pred_check
      _
    $region3: #{outside_com_forward.1} parent=1 // pred_check_branch
      %13 = sbr.rel (0) target = $region5
    $region4: #{outside_com_forward.1} parent=1 // pred_region
      _
    $region5: #{outside_com_forward.1} parent=1 // pred_fallthru
      _
    // Predicated region
    $region6: #{outside_com_forward.1} parent=1 // pred_check
      _
    $region7: #{outside_com_forward.1} parent=1 // pred_check_branch
      %15 = sbr.rel (0) target = $region9
    $region8: #{outside_com_forward.1} parent=1 // pred_region
      _
    $region9: #{outside_com_forward.1} parent=1 // pred_fallthru
      _
    // Predicated region
    $region10: #{outside_com_forward.1} parent=1 // pred_check
      _
    $region11: #{outside_com_forward.1} parent=1 // pred_check_branch
      %17 = sbr.rel (0) target = $region13
    $region12: #{outside_com_forward.1} parent=1 // pred_region
      _
    $region13: #{outside_com_forward.1} parent=1 // pred_fallthru
      _
    // Predicated region
    $region14: #{outside_com_forward.1} parent=1 // pred_check
      _
    $region15: #{outside_com_forward.1} parent=1 // pred_check_branch
      %19 = sbr.rel (0) target = $region17
    $region16: #{outside_com_forward.1} parent=1 // pred_region
      %s21 = ssub.s32 256, 256
      %22 = vsyncadd [#allocation3], %s21
      %s23 = sshll.u32 [#allocation2], 4
      %s24 = int_to_ptr.vmem [resolvable:$true] %s23
      %29 = dma.hbm_to_vmem [thread:$0]  %s3, 256, %s24, [#allocation3], 64, 64, 4
    $region17: #{outside_com_forward.1} parent=1 // pred_fallthru
      _
    // Predicated region
    $region18: #{outside_com_forward.1} parent=1 // pred_check
      _
    $region19: #{outside_com_forward.1} parent=1 // pred_check_branch
      %31 = sbr.rel (0) target = $region21
    $region20: #{outside_com_forward.1} parent=1 // pred_region
      _
    $region21: #{outside_com_forward.1} parent=1 // pred_fallthru
      _
    // Predicated region
    $region22: #{outside_com_forward.1} parent=1 // pred_check
      _
    $region23: #{outside_com_forward.1} parent=1 // pred_check_branch
      %33 = sbr.rel (0) target = $region25
    $region24: #{outside_com_forward.1} parent=1 // pred_region
      %34 = dma.done [#allocation3], 256
    $region25: #{outside_com_forward.1} parent=1 // pred_fallthru
      _
    %v36 = vld [vmem:[%s4] sm:$0xff]
    %v37 = vld [vmem:[%s0] sm:$0xff]
    %v38 = vpack.c.bf16 %v37, %v37
    %v39 = vld [vmem:[%s1] sm:$0xf]
    %v40 = vld [vmem:[%s1 + $0x4] sm:$0xf]
    %v43 = vunpack.c.l.b16 %v39
    %v44 = vunpack.c.l.b16 %v40
    %v45 = vpack.c.b16 %v44, %v43
    %vm47 = vcmask 130048
    %v49 = vsel %vm47, %v38, 0
    %51 = vmatprep.subr.bf16.mxu0 0
    %52 = vmatpush1.bf16.msra.mxu0 0
    %53 = vmatprep.subr.bf16.mxu0 0
    %54 = vmatpush1.bf16.msra.mxu0 0
    %55 = vmatprep.subr.bf16.mxu0 0
    %56 = vmatpush1.bf16.msra.mxu0 0
    %57 = vmatprep.subr.bf16.mxu0 0
    %58 = vmatpush1.bf16.msra.mxu0 0
    %59 = vmatprep.subr.bf16.mxu0 0
    %60 = vmatpush1.bf16.msra.mxu0 0
    %61 = vmatprep.subr.bf16.mxu0 0
    %62 = vmatpush1.bf16.msra.mxu0 0
    %63 = vmatprep.subr.bf16.mxu0 0
    %64 = vmatpush1.bf16.msra.mxu0 0
    %65 = vmatprep.subr.bf16.mxu0 0
    %66 = vmatpush1.bf16.msra.mxu0 %v45
    %67 = vmatprep.subr.bf16.mxu0 0
    %68 = vmatpush2.bf16.msra.mxu0 0
    %69 = vmatprep.subr.bf16.mxu0 0
    %70 = vmatpush2.bf16.msra.mxu0 0
    %71 = vmatprep.subr.bf16.mxu0 0
    %72 = vmatpush2.bf16.msra.mxu0 0
    %73 = vmatprep.subr.bf16.mxu0 0
    %74 = vmatpush2.bf16.msra.mxu0 0
    %75 = vmatprep.subr.bf16.mxu0 0
    %76 = vmatpush2.bf16.msra.mxu0 0
    %77 = vmatprep.subr.bf16.mxu0 0
    %78 = vmatpush2.bf16.msra.mxu0 0
    %79 = vmatprep.subr.bf16.mxu0 0
    %80 = vmatpush2.bf16.msra.mxu0 0
    %81 = vmatprep.subr.bf16.mxu0 0
    %82 = vmatpush2.bf16.msra.mxu0 0
    %83 = vmatprep.mubr.bf16.mxu0 0
    %84 = vmatmul.mubr.bf16.gmra.mxu0 %v49
    %v85 = vpop.f32.mrf.mxu0
    %v86 = vadd.f32 0.0, %v85
    %v87 = vpop.f32.mrf.mxu0
    %v88 = vpop.f32.mrf.mxu0
    %v89 = vpop.f32.mrf.mxu0
    %90 = vdwg.mxu0
    %vm91 = vcmask 261120
    %v92 = vsel %vm91, %v86, 0.0
    %v93 = vrot.slane %v92, 4
    %v94 = vadd.f32 %v92, %v93
    %v95 = vrot.slane %v94, 2
    %v96 = vadd.f32 %v94, %v95
    %v97 = vrot.slane %v96, 1
    %v98 = vadd.f32 %v96, %v97
    %v99 = vmul.f32 %v98, 0.125
    %v100 = vsub.f32 %v86, %v99
    %v101 = vmul.f32 %v100, %v100
    %v102 = vsel %vm91, %v101, 0.0
    %v103 = vrot.slane %v102, 4
    %v104 = vadd.f32 %v102, %v103
    %v105 = vrot.slane %v104, 2
    %v106 = vadd.f32 %v104, %v105
    %v107 = vrot.slane %v106, 1
    %v108 = vadd.f32 %v106, %v107
    %v109 = vmul.f32 %v108, 0.125
    %v110 = vadd.f32 %v109, 1e-05
    %v111 = vrsqrt.pop %v110
    %v112 = vmul.f32 %v36, %v111
    %v113 = vlaneseq
    %v114 = vshrl.u32 %v113, 7
    %v115 = vsub.s32 0, %v114
    %v116 = vrot.slane %v112, %v115
    %v117 = vmul.f32 %v100, %v116
    %v118 = vlaneseq
    %v119 = vshrl.u32 %v118, 7
    %v120 = vsub.s32 1, %v119
    %v121 = vrot.slane %v36, %v120
    %v122 = vadd.f32 %v117, %v121
    %v123 = vmax.f32 %v122, 0.0
    %v124 = vpack.c.bf16 %v123, %v123
    %v125 = vld [vmem:[%s2] sm:$0xf]
    %v126 = vld [vmem:[%s2 + $0x4] sm:$0xf]
    %v127 = vld [vmem:[%s2 + $0x8] sm:$0xf]
    %v128 = vld [vmem:[%s2 + $0xc] sm:$0xf]
    %v133 = vunpack.c.l.b16 %v125
    %v134 = vunpack.c.l.b16 %v126
    %v135 = vunpack.c.l.b16 %v127
    %v136 = vunpack.c.l.b16 %v128
    %v137 = vpack.c.b16 %v134, %v133
    %v138 = vpack.c.b16 %v136, %v135
    %v142 = vsel %vm91, %v124, 0
    %144 = vmatprep.subr.bf16.mxu0 0
    %145 = vmatpush1.bf16.msra.mxu0 0
    %146 = vmatprep.subr.bf16.mxu0 0
    %147 = vmatpush1.bf16.msra.mxu0 0
    %148 = vmatprep.subr.bf16.mxu0 0
    %149 = vmatpush1.bf16.msra.mxu0 0
    %150 = vmatprep.subr.bf16.mxu0 0
    %151 = vmatpush1.bf16.msra.mxu0 0
    %152 = vmatprep.subr.bf16.mxu0 0
    %153 = vmatpush1.bf16.msra.mxu0 0
    %154 = vmatprep.subr.bf16.mxu0 0
    %155 = vmatpush1.bf16.msra.mxu0 0
    %156 = vmatprep.subr.bf16.mxu0 0
    %157 = vmatpush1.bf16.msra.mxu0 %v138
    %158 = vmatprep.subr.bf16.mxu0 0
    %159 = vmatpush1.bf16.msra.mxu0 %v137
    %160 = vmatprep.subr.bf16.mxu0 0
    %161 = vmatpush2.bf16.msra.mxu0 0
    %162 = vmatprep.subr.bf16.mxu0 0
    %163 = vmatpush2.bf16.msra.mxu0 0
    %164 = vmatprep.subr.bf16.mxu0 0
    %165 = vmatpush2.bf16.msra.mxu0 0
    %166 = vmatprep.subr.bf16.mxu0 0
    %167 = vmatpush2.bf16.msra.mxu0 0
    %168 = vmatprep.subr.bf16.mxu0 0
    %169 = vmatpush2.bf16.msra.mxu0 0
    %170 = vmatprep.subr.bf16.mxu0 0
    %171 = vmatpush2.bf16.msra.mxu0 0
    %172 = vmatprep.subr.bf16.mxu0 0
    %173 = vmatpush2.bf16.msra.mxu0 0
    %174 = vmatprep.subr.bf16.mxu0 0
    %175 = vmatpush2.bf16.msra.mxu0 0
    %176 = vmatprep.mubr.bf16.mxu0 0
    %177 = vmatmul.mubr.bf16.gmra.mxu0 %v142
    %v178 = vpop.f32.mrf.mxu0
    %v179 = vadd.f32 0.0, %v178
    %v180 = vpop.f32.mrf.mxu0
    %v181 = vpop.f32.mrf.mxu0
    %v182 = vpop.f32.mrf.mxu0
    %183 = vdwg.mxu0
    %v184 = vsel %vm91, %v179, 0.0
    %v185 = vrot.slane %v184, 4
    %v186 = vadd.f32 %v184, %v185
    %v187 = vrot.slane %v186, 2
    %v188 = vadd.f32 %v186, %v187
    %v189 = vrot.slane %v188, 1
    %v190 = vadd.f32 %v188, %v189
    %v191 = vmul.f32 %v190, 0.125
    %v192 = vsub.f32 %v179, %v191
    %v193 = vmul.f32 %v192, %v192
    %v194 = vsel %vm91, %v193, 0.0
    %v195 = vrot.slane %v194, 4
    %v196 = vadd.f32 %v194, %v195
    %v197 = vrot.slane %v196, 2
    %v198 = vadd.f32 %v196, %v197
    %v199 = vrot.slane %v198, 1
    %v200 = vadd.f32 %v198, %v199
    %v201 = vmul.f32 %v200, 0.125
    %v202 = vadd.f32 %v201, 1e-05
    %v203 = vrsqrt.pop %v202
    %v204 = vmul.f32 %v36, %v203
    %v205 = vlaneseq
    %v206 = vshrl.u32 %v205, 7
    %v207 = vsub.s32 2, %v206
    %v208 = vrot.slane %v204, %v207
    %v209 = vmul.f32 %v192, %v208
    %v210 = vlaneseq
    %v211 = vshrl.u32 %v210, 7
    %v212 = vsub.s32 3, %v211
    %v213 = vrot.slane %v36, %v212
    %v214 = vadd.f32 %v209, %v213
    %v215 = vmax.f32 %v214, 0.0
    %v216 = vpack.c.bf16 %v215, %v215
    %v217 = vld [vmem:[#allocation2] sm:$0xf]
    %v218 = vld [vmem:[#allocation2 + $0x4] sm:$0xf]
    %v219 = vld [vmem:[#allocation2 + $0x8] sm:$0xf]
    %v220 = vld [vmem:[#allocation2 + $0xc] sm:$0xf]
    %v221 = vlaneseq
    %v222 = vshrl.u32 %v221, 7
    %v223 = vsub.s32 4, %v222
    %v224 = vrot.slane %v36, %v223
    %v229 = vunpack.c.l.b16 %v217
    %v230 = vunpack.c.l.b16 %v218
    %v231 = vunpack.c.l.b16 %v219
    %v232 = vunpack.c.l.b16 %v220
    %v233 = vpack.c.b16 %v230, %v229
    %v234 = vpack.c.b16 %v232, %v231
    %v238 = vsel %vm91, %v216, 0
    %240 = vmatprep.subr.bf16.mxu0 0
    %241 = vmatpush1.bf16.msra.mxu0 0
    %242 = vmatprep.subr.bf16.mxu0 0
    %243 = vmatpush1.bf16.msra.mxu0 0
    %244 = vmatprep.subr.bf16.mxu0 0
    %245 = vmatpush1.bf16.msra.mxu0 0
    %246 = vmatprep.subr.bf16.mxu0 0
    %247 = vmatpush1.bf16.msra.mxu0 0
    %248 = vmatprep.subr.bf16.mxu0 0
    %249 = vmatpush1.bf16.msra.mxu0 0
    %250 = vmatprep.subr.bf16.mxu0 0
    %251 = vmatpush1.bf16.msra.mxu0 0
    %252 = vmatprep.subr.bf16.mxu0 0
    %253 = vmatpush1.bf16.msra.mxu0 %v234
    %254 = vmatprep.subr.bf16.mxu0 0
    %255 = vmatpush1.bf16.msra.mxu0 %v233
    %256 = vmatprep.subr.bf16.mxu0 0
    %257 = vmatpush2.bf16.msra.mxu0 0
    %258 = vmatprep.subr.bf16.mxu0 0
    %259 = vmatpush2.bf16.msra.mxu0 0
    %260 = vmatprep.subr.bf16.mxu0 0
    %261 = vmatpush2.bf16.msra.mxu0 0
    %262 = vmatprep.subr.bf16.mxu0 0
    %263 = vmatpush2.bf16.msra.mxu0 0
    %264 = vmatprep.subr.bf16.mxu0 0
    %265 = vmatpush2.bf16.msra.mxu0 0
    %266 = vmatprep.subr.bf16.mxu0 0
    %267 = vmatpush2.bf16.msra.mxu0 0
    %268 = vmatprep.subr.bf16.mxu0 0
    %269 = vmatpush2.bf16.msra.mxu0 0
    %270 = vmatprep.subr.bf16.mxu0 0
    %271 = vmatpush2.bf16.msra.mxu0 0
    %272 = vmatprep.mubr.bf16.mxu0 0
    %273 = vmatmul.mubr.bf16.gmra.mxu0 %v238
    %v274 = vpop.f32.mrf.mxu0
    %v275 = vadd.f32 %v224, %v274
    %v276 = vpop.f32.mrf.mxu0
    %v277 = vpop.f32.mrf.mxu0
    %v278 = vpop.f32.mrf.mxu0
    %279 = vdwg.mxu0
    %280 = vst [vmem:[#allocation5] sm:$0xff] %v275
    // Predicated region
    $region26: #{outside_com_forward.1} parent=1 // pred_check
      _
    $region27: #{outside_com_forward.1} parent=1 // pred_check_branch
      %282 = sbr.rel (0) target = $region29
    $region28: #{outside_com_forward.1} parent=1 // pred_region
      %s284 = ssub.s32 128, 128
      %285 = vsyncadd [#allocation4], %s284
      %s287 = sshll.u32 [#allocation5], 4
      %s288 = int_to_ptr.vmem [resolvable:$true] %s287
      %290 = dma.vmem_to_hbm [thread:$0]  %s288, 128, %s5, [#allocation4]
    $region29: #{outside_com_forward.1} parent=1 // pred_fallthru
      _
    // Predicated region
    $region30: #{outside_com_forward.1} parent=1 // pred_check
      _
    $region31: #{outside_com_forward.1} parent=1 // pred_check_branch
      %292 = sbr.rel (0) target = $region33
    $region32: #{outside_com_forward.1} parent=1 // pred_region
      %293 = dma.done [#allocation4], 128
    $region33: #{outside_com_forward.1} parent=1 // pred_fallthru
      _
    %294 = vsyncpa [#allocation3], 1
    %295 = vsyncpa [#allocation4], 1

</llo_original>
